<compile_context>
chip_gen: v6e
topology: v6e:2x2x1
jax: 0.10.0
libtpu: 0.0.40
codegen_flags: <defaults>
</compile_context>

<pallas_src>
import functools

import jax
import jax.numpy as jnp
from jax.experimental import pallas as pl
from jax.experimental.pallas import tpu as pltpu


def _xe_dice_kernel(pred_ref, true_ref, out_ref, *, p_hw, tile_p):
    # pred_ref: (1, 2, TILE_P) logits (any float dtype, cast to f32 here)
    # true_ref: (1, 1, TILE_P) int32 labels (255 = ignore)
    # out_ref : (1, 1, 1, 4) f32 partial sums [sum_xe, n_valid, inter, union]
    logits = pred_ref[0].astype(jnp.float32)              # (2, TILE_P)
    d = logits[1:2, :] - logits[0:1, :]                    # (1, TILE_P) logit1 - logit0
    lab = true_ref[0]                                      # (1, TILE_P) int32

    # Valid = real pixel of this image (ragged-tile mask) AND not the ignore label.
    pix = (pl.program_id(1) * tile_p
           + jax.lax.broadcasted_iota(jnp.int32, (1, tile_p), 1))
    valid = jnp.logical_and(lab != 255, pix < p_hw)

    tf = jnp.where(lab == 1, 1.0, 0.0)                     # binary target as f32

    # Stable binary softmax pieces (C == 2):
    #   softplus(d) = log(1 + e^d);  CE = softplus(d) - y*d;  p1 = sigmoid(d).
    sp = jnp.maximum(d, 0.0) + jnp.log(1.0 + jnp.exp(-jnp.abs(d)))
    xe = sp - tf * d                                        # per-pixel cross-entropy
    p1 = jnp.exp(d - sp)                                    # softmax(pred)[:, 1]

    zero = jnp.zeros_like(d)
    s_xe = jnp.sum(jnp.where(valid, xe, zero))
    s_cnt = jnp.sum(jnp.where(valid, 1.0, 0.0))
    s_int = jnp.sum(jnp.where(valid, p1 * tf, zero))
    s_uni = jnp.sum(jnp.where(valid, p1 + tf, zero))

    lane = jax.lax.broadcasted_iota(jnp.int32, (1, 1, 1, 4), 3)
    out_ref[...] = (jnp.where(lane == 0, s_xe, 0.0)
                    + jnp.where(lane == 1, s_cnt, 0.0)
                    + jnp.where(lane == 2, s_int, 0.0)
                    + jnp.where(lane == 3, s_uni, 0.0))


def xe_dice_loss(pred, true, *, tile_pixels=64 * 1024):
    """pred: (N, 2, H, W) float logits (f32 or bf16); true: (N, H, W) int labels,
    255 = ignore. Returns scalar 0.5*CE + 0.5*Dice.
    Note: returns NaN if every pixel is ignored (same hazard as the PyTorch ref)."""
    N, C, H, W = pred.shape
    assert C == 2, "XEDiceLoss dice term hard-codes binary segmentation (C == 2)."
    assert tile_pixels % 128 == 0
    p_hw = H * W

    # Free reshapes only: channels on the sublane axis, pixels on lanes.
    pred3 = pred.reshape(N, C, p_hw)                       # keep input dtype (bf16 ok)
    true3 = true.reshape(N, 1, p_hw).astype(jnp.int32)

    # Pixel tile: as large as allowed (amortize per-step overhead), multiple of
    # 128 on the lane axis, no host-side padding (ragged tail masked in-kernel).
    if p_hw % 128 == 0:
        tile_p = min(tile_pixels, p_hw)
    elif p_hw > 128:
        tile_p = min(tile_pixels, (p_hw // 128) * 128)
    else:
        tile_p = p_hw
    n_pt = pl.cdiv(p_hw, tile_p)

    kernel = functools.partial(_xe_dice_kernel, p_hw=p_hw, tile_p=tile_p)

    parts = pl.pallas_call(
        kernel,
        out_shape=jax.ShapeDtypeStruct((N, n_pt, 1, 4), jnp.float32),
        grid_spec=pltpu.PrefetchScalarGridSpec(
            num_scalar_prefetch=0,
            grid=(N, n_pt),
            in_specs=[
                pl.BlockSpec((1, C, tile_p), lambda n, p: (n, 0, p)),
                pl.BlockSpec((1, 1, tile_p), lambda n, p: (n, 0, p)),
            ],
            out_specs=pl.BlockSpec((1, 1, 1, 4), lambda n, p: (n, p, 0, 0)),
        ),
        compiler_params=pltpu.CompilerParams(
            # Both axes independent -> v7x megacore can shard tiles across TCs.
            dimension_semantics=("parallel", "parallel"),
            # 64K-pixel tiles stay well under this even with double-buffered
            # inputs; fits v5e/v6e (128 MiB phys) and v7x (64 MiB phys).
            vmem_limit_bytes=48 * 1024 * 1024,
        ),
    )(pred3, true3)

    sums = jnp.sum(parts.reshape(-1, 4), axis=0)            # combine partials
    xe_mean = sums[0] / sums[1]
    dice = 1.0 - 2.0 * sums[2] / (sums[3] + 1e-7)
    return 0.5 * xe_mean + 0.5 * dice


def _reference_loss(pred, true):
    """Plain-JAX reference mirroring the PyTorch forward."""
    valid = true != 255
    clean = jnp.where(valid, true, 0)
    logits = pred.astype(jnp.float32)
    logp = jax.nn.log_softmax(logits, axis=1)
    xe = -jnp.take_along_axis(logp, clean[:, None], axis=1)[:, 0]
    xe_mean = jnp.sum(xe * valid) / jnp.sum(valid)
    p1 = jax.nn.softmax(logits, axis=1)[:, 1]
    inter = jnp.sum(p1 * true * valid)
    union = jnp.sum((p1 + true) * valid)
    dice = 1.0 - 2.0 * inter / (union + 1e-7)
    return 0.5 * xe_mean + 0.5 * dice


if __name__ == "__main__":
    key = jax.random.PRNGKey(0)
    k1, k2, k3 = jax.random.split(key, 3)

    N, C, H, W = 2, 2, 16, 16
    pred = jax.random.normal(k1, (N, C, H, W), dtype=jnp.float32)
    labels = jax.random.randint(k2, (N, H, W), 0, 2, dtype=jnp.int32)
    ignore = jax.random.uniform(k3, (N, H, W)) < 0.1
    true = jnp.where(ignore, 255, labels).astype(jnp.int32)

    loss = jax.jit(xe_dice_loss)(pred, true)
    loss = jax.block_until_ready(loss)

    ref = _reference_loss(pred, true)
    assert jnp.allclose(loss, ref, atol=1e-5, rtol=1e-5), (loss, ref)

    print("KERNEL_OK")
</pallas_src>

<mosaic_0001>
module attributes {stable_mosaic.version = 11 : i64} {
  func.func @_xe_dice_kernel(%arg0: i32, %arg1: i32, %arg2: memref<1x2x256xf32, #tpu.memory_space<vmem>>, %arg3: memref<1x1x256xi32, #tpu.memory_space<vmem>>, %arg4: memref<1x1x1x4xf32, #tpu.memory_space<vmem>>) attributes {dimension_semantics = [#tpu.dimension_semantics<parallel>, #tpu.dimension_semantics<parallel>], iteration_bounds = array<i64: 2, 1>, scalar_prefetch = 0 : i64, scratch_operands = 0 : i64, tpu.core_type = #tpu.core_type<tc>, window_params = [{transform_indices = @transform_0, window_bounds = array<i64: 1, 2, 256>}, {transform_indices = @transform_1, window_bounds = array<i64: 1, 1, 256>}, {transform_indices = @transform_2, window_bounds = array<i64: 1, 1, 1, 4>}]} {
    %c0 = arith.constant 0 : index
    %c0_0 = arith.constant 0 : index
    %c0_1 = arith.constant 0 : index
    %0 = vector.load %arg2[%c0, %c0_0, %c0_1] : memref<1x2x256xf32, #tpu.memory_space<vmem>>, vector<1x2x256xf32>
    %1 = vector.shape_cast %0 : vector<1x2x256xf32> to vector<2x256xf32>
    %2 = vector.extract_strided_slice %1 {offsets = [1, 0], sizes = [1, 256], strides = [1, 1]} : vector<2x256xf32> to vector<1x256xf32>
    %3 = vector.extract_strided_slice %1 {offsets = [0, 0], sizes = [1, 256], strides = [1, 1]} : vector<2x256xf32> to vector<1x256xf32>
    %4 = arith.subf %2, %3 : vector<1x256xf32>
    %c0_2 = arith.constant 0 : index
    %c0_3 = arith.constant 0 : index
    %c0_4 = arith.constant 0 : index
    %5 = vector.load %arg3[%c0_2, %c0_3, %c0_4] : memref<1x1x256xi32, #tpu.memory_space<vmem>>, vector<1x1x256xi32>
    %6 = vector.shape_cast %5 : vector<1x1x256xi32> to vector<1x256xi32>
    %c256_i32 = arith.constant 256 : i32
    %7 = arith.muli %arg1, %c256_i32 : i32
    %8 = tpu.iota {dimensions = array<i32: 1>} : vector<1x256xi32>
    %9 = vector.broadcast %7 : i32 to vector<1x256xi32>
    %10 = arith.addi %9, %8 : vector<1x256xi32>
    %c255_i32 = arith.constant 255 : i32
    %11 = vector.broadcast %c255_i32 : i32 to vector<1x256xi32>
    %12 = arith.cmpi ne, %6, %11 : vector<1x256xi32>
    %c256_i32_5 = arith.constant 256 : i32
    %13 = vector.broadcast %c256_i32_5 : i32 to vector<1x256xi32>
    %14 = arith.cmpi slt, %10, %13 : vector<1x256xi32>
    %15 = arith.andi %12, %14 : vector<1x256xi1>
    %c1_i32 = arith.constant 1 : i32
    %16 = vector.broadcast %c1_i32 : i32 to vector<1x256xi32>
    %17 = arith.cmpi eq, %6, %16 : vector<1x256xi32>
    %cst = arith.constant 1.000000e+00 : f32
    %cst_6 = arith.constant 0.000000e+00 : f32
    %18 = vector.broadcast %cst : f32 to vector<1x256xf32>
    %19 = vector.broadcast %cst_6 : f32 to vector<1x256xf32>
    %20 = arith.select %17, %18, %19 : vector<1x256xi1>, vector<1x256xf32>
    %cst_7 = arith.constant 0.000000e+00 : f32
    %21 = vector.broadcast %cst_7 : f32 to vector<1x256xf32>
    %22 = arith.maximumf %4, %21 : vector<1x256xf32>
    %23 = math.absf %4 : vector<1x256xf32>
    %cst_8 = arith.constant 0.000000e+00 : f32
    %24 = vector.broadcast %cst_8 : f32 to vector<1x256xf32>
    %25 = arith.subf %24, %23 : vector<1x256xf32>
    %26 = math.exp %25 : vector<1x256xf32>
    %cst_9 = arith.constant 1.000000e+00 : f32
    %27 = vector.broadcast %cst_9 : f32 to vector<1x256xf32>
    %28 = arith.addf %27, %26 : vector<1x256xf32>
    %29 = math.log %28 : vector<1x256xf32>
    %30 = arith.addf %22, %29 : vector<1x256xf32>
    %31 = arith.mulf %20, %4 : vector<1x256xf32>
    %32 = arith.subf %30, %31 : vector<1x256xf32>
    %33 = arith.subf %4, %30 : vector<1x256xf32>
    %34 = math.exp %33 : vector<1x256xf32>
    %cst_10 = arith.constant 0.000000e+00 : f32
    %35 = vector.broadcast %cst_10 : f32 to vector<1x256xf32>
    %36 = arith.select %15, %32, %35 : vector<1x256xi1>, vector<1x256xf32>
    %37 = vector.shape_cast %36 : vector<1x256xf32> to vector<1x1x256xf32>
    %cst_11 = arith.constant dense<0.000000e+00> : vector<1xf32>
    %38 = vector.multi_reduction <add>, %37, %cst_11 [1, 2] : vector<1x1x256xf32> to vector<1xf32>
    %39 = vector.shape_cast %38 : vector<1xf32> to vector<1x1x1xf32>
    %40 = vector.extract %39[0, 0, 0] : f32 from vector<1x1x1xf32>
    %cst_12 = arith.constant 1.000000e+00 : f32
    %cst_13 = arith.constant 0.000000e+00 : f32
    %41 = vector.broadcast %cst_12 : f32 to vector<1x256xf32>
    %42 = vector.broadcast %cst_13 : f32 to vector<1x256xf32>
    %43 = arith.select %15, %41, %42 : vector<1x256xi1>, vector<1x256xf32>
    %44 = vector.shape_cast %43 : vector<1x256xf32> to vector<1x1x256xf32>
    %cst_14 = arith.constant dense<0.000000e+00> : vector<1xf32>
    %45 = vector.multi_reduction <add>, %44, %cst_14 [1, 2] : vector<1x1x256xf32> to vector<1xf32>
    %46 = vector.shape_cast %45 : vector<1xf32> to vector<1x1x1xf32>
    %47 = vector.extract %46[0, 0, 0] : f32 from vector<1x1x1xf32>
    %48 = arith.mulf %34, %20 : vector<1x256xf32>
    %49 = arith.select %15, %48, %35 : vector<1x256xi1>, vector<1x256xf32>
    %50 = vector.shape_cast %49 : vector<1x256xf32> to vector<1x1x256xf32>
    %cst_15 = arith.constant dense<0.000000e+00> : vector<1xf32>
    %51 = vector.multi_reduction <add>, %50, %cst_15 [1, 2] : vector<1x1x256xf32> to vector<1xf32>
    %52 = vector.shape_cast %51 : vector<1xf32> to vector<1x1x1xf32>
    %53 = vector.extract %52[0, 0, 0] : f32 from vector<1x1x1xf32>
    %54 = arith.addf %34, %20 : vector<1x256xf32>
    %55 = arith.select %15, %54, %35 : vector<1x256xi1>, vector<1x256xf32>
    %56 = vector.shape_cast %55 : vector<1x256xf32> to vector<1x1x256xf32>
    %cst_16 = arith.constant dense<0.000000e+00> : vector<1xf32>
    %57 = vector.multi_reduction <add>, %56, %cst_16 [1, 2] : vector<1x1x256xf32> to vector<1xf32>
    %58 = vector.shape_cast %57 : vector<1xf32> to vector<1x1x1xf32>
    %59 = vector.extract %58[0, 0, 0] : f32 from vector<1x1x1xf32>
    %60 = tpu.iota {dimensions = array<i32: 3>} : vector<1x1x1x4xi32>
    %c0_i32 = arith.constant 0 : i32
    %61 = vector.broadcast %c0_i32 : i32 to vector<1x1x1x4xi32>
    %62 = arith.cmpi eq, %60, %61 : vector<1x1x1x4xi32>
    %cst_17 = arith.constant 0.000000e+00 : f32
    %63 = vector.broadcast %40 : f32 to vector<1x1x1x4xf32>
    %64 = vector.broadcast %cst_17 : f32 to vector<1x1x1x4xf32>
    %65 = arith.select %62, %63, %64 : vector<1x1x1x4xi1>, vector<1x1x1x4xf32>
    %c1_i32_18 = arith.constant 1 : i32
    %66 = vector.broadcast %c1_i32_18 : i32 to vector<1x1x1x4xi32>
    %67 = arith.cmpi eq, %60, %66 : vector<1x1x1x4xi32>
    %cst_19 = arith.constant 0.000000e+00 : f32
    %68 = vector.broadcast %47 : f32 to vector<1x1x1x4xf32>
    %69 = vector.broadcast %cst_19 : f32 to vector<1x1x1x4xf32>
    %70 = arith.select %67, %68, %69 : vector<1x1x1x4xi1>, vector<1x1x1x4xf32>
    %71 = arith.addf %65, %70 : vector<1x1x1x4xf32>
    %c2_i32 = arith.constant 2 : i32
    %72 = vector.broadcast %c2_i32 : i32 to vector<1x1x1x4xi32>
    %73 = arith.cmpi eq, %60, %72 : vector<1x1x1x4xi32>
    %cst_20 = arith.constant 0.000000e+00 : f32
    %74 = vector.broadcast %53 : f32 to vector<1x1x1x4xf32>
    %75 = vector.broadcast %cst_20 : f32 to vector<1x1x1x4xf32>
    %76 = arith.select %73, %74, %75 : vector<1x1x1x4xi1>, vector<1x1x1x4xf32>
    %77 = arith.addf %71, %76 : vector<1x1x1x4xf32>
    %c3_i32 = arith.constant 3 : i32
    %78 = vector.broadcast %c3_i32 : i32 to vector<1x1x1x4xi32>
    %79 = arith.cmpi eq, %60, %78 : vector<1x1x1x4xi32>
    %cst_21 = arith.constant 0.000000e+00 : f32
    %80 = vector.broadcast %59 : f32 to vector<1x1x1x4xf32>
    %81 = vector.broadcast %cst_21 : f32 to vector<1x1x1x4xf32>
    %82 = arith.select %79, %80, %81 : vector<1x1x1x4xi1>, vector<1x1x1x4xf32>
    %83 = arith.addf %77, %82 : vector<1x1x1x4xf32>
    %c0_22 = arith.constant 0 : index
    %c0_23 = arith.constant 0 : index
    %c0_24 = arith.constant 0 : index
    %c0_25 = arith.constant 0 : index
    %84 = vector.load %arg4[%c0_22, %c0_23, %c0_24, %c0_25] : memref<1x1x1x4xf32, #tpu.memory_space<vmem>>, vector<1x1x1x4xf32>
    tpu.vector_store %arg4[%c0_22, %c0_23, %c0_24, %c0_25], %83 {strides = array<i32>} : memref<1x1x1x4xf32, #tpu.memory_space<vmem>>, vector<1x1x1x4xf32>,
    return
  }
  func.func @transform_0(%arg0: i32, %arg1: i32) -> (i32, i32, i32) {
    %c0_i32 = arith.constant 0 : i32
    %c0_i32_0 = arith.constant 0 : i32
    return %arg0, %c0_i32, %arg1 : i32, i32, i32
  }
  func.func @transform_1(%arg0: i32, %arg1: i32) -> (i32, i32, i32) {
    %c0_i32 = arith.constant 0 : i32
    %c0_i32_0 = arith.constant 0 : i32
    return %arg0, %c0_i32, %arg1 : i32, i32, i32
  }
  func.func @transform_2(%arg0: i32, %arg1: i32) -> (i32, i32, i32, i32) {
    %c0_i32 = arith.constant 0 : i32
    %c0_i32_0 = arith.constant 0 : i32
    %c0_i32_1 = arith.constant 0 : i32
    return %arg0, %arg1, %c0_i32, %c0_i32_0 : i32, i32, i32, i32
  }
}

</mosaic_0001>

<llo_original>
// kernel: xe_dice_loss.1
$region0: #{xe_dice_loss.1}
  #allocation0 [shape = 'u32[]', space=smem, size = 0x4, offset = 0x4, fixed_abs, tag = 'smem constant byte address 0x4 - core index']
  #allocation1 [shape = 'u32[144,128]{1,0:T(1,128)}', space=vmem, size = 0x12000, scoped, tag = 'internal scratch']
  %s0 = inlined_call_operand.vmem [shape: f32[2,2,256], index: 0, kind: input, shape index: {}]
  %s1 = inlined_call_operand.vmem [shape: s32[2,1,256], index: 1, kind: input, shape index: {}]
  %s2 = inlined_call_operand.vmem [shape: f32[2,1,1,4], index: 2, kind: output, shape index: {}]
  %s3 = sld [smem:[#allocation0]]
  $region41: #{xe_dice_loss.1} parent=0
    _
  %s5 = ssub.s32 1, %s3
  %s6 = scalar_select 0, %s5, %s3
  loop: start=0, step=1, limit=4
  $region2: #{xe_dice_loss.1} parent=0 // loop_pre_header
    _
  $region3: #{xe_dice_loss.1} parent=0 // loop_header
    %s8 = sphi 0, %s12
    %p9 = scmp.ge.s32.totalorder %s8, 4
    %s15 = sphi 0, %s27
    %s16 = sphi 0, %s23
    %s17 = sphi 0, %s15
    %s18 = sphi 0, %s16
    %s19 = sphi 0, %s17
    %s20 = sphi 0, %s18
    %s32 = sphi 0, %s34
    %s35 = sphi 0, %s32
    %s36 = sphi 0, %s35
    %s52 = sphi 0, %s36
    %s60 = sphi 0, %s62
    %s63 = sphi 0, %s60
    %s64 = sphi 0, %s63
    %s80 = sphi 0, %s64
    %s88 = sphi 0, %s90
    %s91 = sphi 0, %s88
    %s92 = sphi 0, %s91
    %s108 = sphi 0, %s92
  $region4: #{xe_dice_loss.1} parent=0 // loop_header_branch
    %11 = sbr.rel (%p9) target = $region8
  $region5: #{xe_dice_loss.1} parent=0 // loop_body
    %s13 = ssub.s32 %s8, 1
    %s14 = ssub.s32 %s8, 2
    %s21 = sadd.s32 1, %s16
    %p22 = scmp.ge.s32.totalorder %s21, 1
    %s23 = scalar_select %p22, 0, %s21
    %s24 = sadd.s32 1, %s15
    %s25 = scalar_select %p22, %s24, %s15
    %p26 = scmp.ge.s32.totalorder %s25, 2
    %s27 = scalar_select %p26, 0, %s25
    %s28 = ssub.s32 %s15, %s27
    %s29 = ssub.s32 %s16, %s23
    %s30 = sor.u32 %s28, %s29
    %p31 = scmp.eq.s32.totalorder %s30, 0
    %s33 = sadd.s32 %s32, 1
    %s34 = scalar_select %p31, %s32, %s33
    %p37 = pneg %p31
    %p38 = scmp.eq.s32.totalorder %s8, 1
    %p39 = por %p37, %p38
    %p40 = scmp.ne.s32.totalorder %s32, %s35
    %p41 = scmp.eq.s32.totalorder %s8, 0
    %p42 = por %p40, %p41
    %p43 = scmp.ne.s32.totalorder %s32, %s35
    %p44 = scmp.eq.s32.totalorder %s13, 1
    %p45 = por %p43, %p44
    %p46 = scmp.ne.s32.totalorder %s35, %s36
    %p47 = scmp.eq.s32.totalorder %s13, 0
    %p48 = por %p46, %p47
    %p49 = scmp.ne.s32.totalorder %s35, %s36
    %p50 = scmp.eq.s32.totalorder %s14, 1
    %p51 = por %p49, %p50
    %p53 = scmp.ne.s32.totalorder %s36, %s52
    %p54 = scmp.eq.s32.totalorder %s14, 0
    %p55 = por %p53, %p54
    %s56 = ssub.s32 %s15, %s27
    %s57 = ssub.s32 %s16, %s23
    %s58 = sor.u32 %s56, %s57
    %p59 = scmp.eq.s32.totalorder %s58, 0
    %s61 = sadd.s32 %s60, 1
    %s62 = scalar_select %p59, %s60, %s61
    %p65 = pneg %p59
    %p66 = scmp.eq.s32.totalorder %s8, 1
    %p67 = por %p65, %p66
    %p68 = scmp.ne.s32.totalorder %s60, %s63
    %p69 = scmp.eq.s32.totalorder %s8, 0
    %p70 = por %p68, %p69
    %p71 = scmp.ne.s32.totalorder %s60, %s63
    %p72 = scmp.eq.s32.totalorder %s13, 1
    %p73 = por %p71, %p72
    %p74 = scmp.ne.s32.totalorder %s63, %s64
    %p75 = scmp.eq.s32.totalorder %s13, 0
    %p76 = por %p74, %p75
    %p77 = scmp.ne.s32.totalorder %s63, %s64
    %p78 = scmp.eq.s32.totalorder %s14, 1
    %p79 = por %p77, %p78
    %p81 = scmp.ne.s32.totalorder %s64, %s80
    %p82 = scmp.eq.s32.totalorder %s14, 0
    %p83 = por %p81, %p82
    %s84 = ssub.s32 %s15, %s27
    %s85 = ssub.s32 %s16, %s23
    %s86 = sor.u32 %s84, %s85
    %p87 = scmp.eq.s32.totalorder %s86, 0
    %s89 = sadd.s32 %s88, 1
    %s90 = scalar_select %p87, %s88, %s89
    %p93 = pneg %p87
    %p94 = scmp.eq.s32.totalorder %s8, 1
    %p95 = por %p93, %p94
    %p96 = scmp.ne.s32.totalorder %s88, %s91
    %p97 = scmp.eq.s32.totalorder %s8, 0
    %p98 = por %p96, %p97
    %p99 = scmp.ne.s32.totalorder %s88, %s91
    %p100 = scmp.eq.s32.totalorder %s13, 1
    %p101 = por %p99, %p100
    %p102 = scmp.ne.s32.totalorder %s91, %s92
    %p103 = scmp.eq.s32.totalorder %s13, 0
    %p104 = por %p102, %p103
    %p105 = scmp.ne.s32.totalorder %s91, %s92
    %p106 = scmp.eq.s32.totalorder %s14, 1
    %p107 = por %p105, %p106
    %p109 = scmp.ne.s32.totalorder %s92, %s108
    %p110 = scmp.eq.s32.totalorder %s14, 0
    %p111 = por %p109, %p110
    %p112 = scmp.le.s32.totalorder 1, %s8
    %p113 = scmp.lt.s32.totalorder %s8, 3
    %p114 = pnand %p112, %p113
    %p115 = pneg %p114
    // Predicated region
    $region9: #{xe_dice_loss.1} parent=5 // pred_check
      _
    $region10: #{xe_dice_loss.1} parent=5 // pred_check_branch
      %117 = sbr.rel (%p114) target = $region12
    $region11: #{xe_dice_loss.1} parent=5 // pred_region
      %s118 = ssub.s32 %s8, 1
    $region12: #{xe_dice_loss.1} parent=5 // pred_fallthru
      _
    %p119 = scmp.lt.s32.totalorder %s8, 2
    // Predicated region
    $region13: #{xe_dice_loss.1} parent=5 // pred_check
      %p120 = pneg %p119
    $region14: #{xe_dice_loss.1} parent=5 // pred_check_branch
      %122 = sbr.rel (%p120) target = $region16
    $region15: #{xe_dice_loss.1} parent=5 // pred_region
      // Predicated region
      $region17: #{xe_dice_loss.1} parent=15 // pred_check
        %p123 = pneg %p42
      $region18: #{xe_dice_loss.1} parent=15 // pred_check_branch
        %125 = sbr.rel (%p123) target = $region20
      $region19: #{xe_dice_loss.1} parent=15 // pred_region
        %s126 = smul.u32 2, %s16
        %p127 = scmp.lt.s32.totalorder %s15, 1
        %s128 = scalar_select %p127, %s15, 1
        %p129 = scmp.lt.s32.totalorder %s126, 1
        %s130 = scalar_select %p129, %s126, 1
        %s131 = smul.addr %s128, 2
        %s132 = sadd.s32 %s130, %s131
        %s133 = smul.addr %s132, 2
        %s134 = scalar_lea.vmem %s0, %s133
        %s135 = smul.u32 2, %s16
      $region20: #{xe_dice_loss.1} parent=15 // pred_fallthru
        _
      // Predicated region
      $region21: #{xe_dice_loss.1} parent=15 // pred_check
        %p136 = pneg %p70
      $region22: #{xe_dice_loss.1} parent=15 // pred_check_branch
        %138 = sbr.rel (%p136) target = $region24
      $region23: #{xe_dice_loss.1} parent=15 // pred_region
        %s139 = smul.u32 2, %s16
        %p140 = scmp.lt.s32.totalorder %s15, 1
        %s141 = scalar_select %p140, %s15, 1
        %p142 = scmp.lt.s32.totalorder %s139, 1
        %s143 = scalar_select %p142, %s139, 1
        %s144 = smul.addr %s141, 2
        %s145 = sadd.s32 %s143, %s144
        %s146 = scalar_lea.vmem %s1, %s145
        %s147 = smul.u32 2, %s16
      $region24: #{xe_dice_loss.1} parent=15 // pred_fallthru
        _
    $region16: #{xe_dice_loss.1} parent=5 // pred_fallthru
      _
    %p148 = scmp.le.s32.totalorder 1, %s8
    %p149 = scmp.lt.s32.totalorder %s8, 3
    %p150 = pnand %p148, %p149
    %p151 = pneg %p150
    // Predicated region
    $region25: #{xe_dice_loss.1} parent=5 // pred_check
      _
    $region26: #{xe_dice_loss.1} parent=5 // pred_check_branch
      %153 = sbr.rel (%p150) target = $region28
    $region27: #{xe_dice_loss.1} parent=5 // pred_region
      %s154 = ssub.s32 %s8, 1
      %s155 = smul.u32 2, %s18
      %p156 = scmp.lt.s32.totalorder %s17, 1
      %s157 = scalar_select %p156, %s17, 1
      %p158 = scmp.lt.s32.totalorder %s155, 1
      %s159 = scalar_select %p158, %s155, 1
      %s160 = smul.addr %s157, 2
      %s161 = sadd.s32 %s159, %s160
      %s162 = smul.addr %s161, 2
      %s163 = scalar_lea.vmem %s0, %s162
      %p164 = pneg %p48
      %p165 = pneg %p45
      %s166 = smul.u32 2, %s18
      %p167 = scmp.lt.s32.totalorder %s17, 1
      %s168 = scalar_select %p167, %s17, 1
      %p169 = scmp.lt.s32.totalorder %s166, 1
      %s170 = scalar_select %p169, %s166, 1
      %s171 = smul.addr %s168, 2
      %s172 = sadd.s32 %s170, %s171
      %s173 = scalar_lea.vmem %s1, %s172
      %p174 = pneg %p76
      %p175 = pneg %p73
      %p176 = pneg %p104
      %p177 = pneg %p101
      %p178 = scmp.lt.s32.totalorder %s17, 1
      %s179 = scalar_select %p178, %s17, 1
      %p180 = scmp.lt.s32.totalorder %s18, 0
      %s181 = scalar_select %p180, %s18, 0
      %s182 = sadd.s32 %s181, %s179
      %s183 = scalar_lea.vmem %s2, %s182
      %s184 = smul.u32 2, %s18
      %p185 = scmp.lt.s32.totalorder %s17, 1
      %s186 = scalar_select %p185, %s17, 1
      %p187 = scmp.lt.s32.totalorder %s184, 1
      %s188 = scalar_select %p187, %s184, 1
      %s189 = smul.addr %s186, 2
      %s190 = sadd.s32 %s188, %s189
      %s191 = smul.addr %s190, 2
      %s192 = scalar_lea.vmem %s0, %s191
      %s193 = smul.u32 2, %s18
      %s194 = smul.u32 2, %s18
      %p195 = scmp.lt.s32.totalorder %s17, 1
      %s196 = scalar_select %p195, %s17, 1
      %p197 = scmp.lt.s32.totalorder %s194, 1
      %s198 = scalar_select %p197, %s194, 1
      %s199 = smul.addr %s196, 2
      %s200 = sadd.s32 %s198, %s199
      %s201 = scalar_lea.vmem %s1, %s200
      %s202 = smul.u32 2, %s18
      %p203 = scmp.lt.s32.totalorder %s17, 1
      %s204 = scalar_select %p203, %s17, 1
      %p205 = scmp.lt.s32.totalorder %s18, 0
      %s206 = scalar_select %p205, %s18, 0
      %s207 = sadd.s32 %s206, %s204
      %s208 = scalar_lea.vmem %s2, %s207
      %v209 = vld [vmem:[%s192] sm:$0xf]
      %v211 = vrot.slane %v209, 7
      %v213 = vsub.f32 %v209, %v211
      %v214 = vld [vmem:[%s201] sm:$0x3]
      %s215 = smul.u32 %s18, 256
      %v216 = vlaneseq
      %v217 = vand.u32 %v216, 127
      %v218 = vadd.s32 %v217, 128
      %v219 = vstv %s215
      %v220 = vadd.s32 %v219, %v217
      %v221 = vadd.s32 %v219, %v218
      %vm222 = vcmp.ne.s32.totalorder %v214, 255
      %vm223 = vcmp.lt.s32.totalorder %v220, 256
      %vm224 = vcmp.lt.s32.totalorder %v221, 256
      %v225 = vsel %vm223, 1, 0
      %v226 = vsel %vm224, 1, 0
      %v227 = vcombine.low %v225, %v226
      %v229 = vunpack.c.l.s4 1966171168
      %v230 = vunpack.c.0.s8 %v229
      %v231 = vlaneseq
      %v232 = vshrl.u32 %v231, 7
      %v233 = vsub.s32 %v230, %v232
      %v234 = vrot.slane %v227, %v233
      %v236 = vunpack.c.l.s4 1966171168
      %v237 = vunpack.c.0.s8 %v236
      %v238 = vlaneseq
      %v239 = vshrl.u32 %v238, 7
      %v240 = vsub.s32 %v237, %v239
      %v241 = vrot.slane %v234, %v240
      %vm242 = vcmp.ne.s32.totalorder %v241, 0
      %vm243 = vmand %vm222, %vm242
      %vm244 = vcmp.eq.s32.totalorder %v214, 1
      %v245 = vsel %vm244, 1.0, 0.0
      %v246 = vmax.f32 %v213, 0.0
      %v247 = vand.u32 2147483647, %v213
      %v248 = vsub.f32 0.0, %v247
      %v249 = vmul.f32 %v248, 1.442695
      %v250 = vpow.pop %v249
      %v251 = vadd.f32 %v250, 1.0
      %v252 = vlog2.pop %v251
      %v253 = vmul.f32 %v252, 0.6931472
      %v254 = vadd.f32 %v246, %v253
      %v257 = vunpack.c.l.s4 1966171168
      %v258 = vunpack.c.0.s8 %v257
      %v259 = vlaneseq
      %v260 = vshrl.u32 %v259, 7
      %v261 = vsub.s32 %v258, %v260
      %v262 = vrot.slane %v213, %v261
      %v263 = vcombine.high %v262, %v262
      %v265 = vmul.f32 %v245, %v263
      %v268 = vunpack.c.l.s4 857870592
      %v269 = vunpack.c.0.s8 %v268
      %v270 = vlaneseq
      %v271 = vshrl.u32 %v270, 7
      %v272 = vsub.s32 %v269, %v271
      %v273 = vrot.slane %v265, %v272
      %v275 = vsub.f32 %v254, %v273
      %v276 = vsub.f32 %v213, %v254
      %v277 = vmul.f32 %v276, 1.442695
      %v278 = vpow.pop %v277
      %v281 = vunpack.c.l.s4 1966171168
      %v282 = vunpack.c.0.s8 %v281
      %v283 = vlaneseq
      %v284 = vshrl.u32 %v283, 7
      %v285 = vsub.s32 %v282, %v284
      %v286 = vrot.slane %v275, %v285
      %v287 = vcombine.high %v286, %v286
      %v289 = vsel %vm243, %v287, 0.0
      %v291 = vlaneseq
      %v292 = vshrl.u32 %v291, 7
      %v293 = vsub.s32 0, %v292
      %v294 = vrot.slane %v289, %v293
      %v295 = vlaneseq
      %v296 = vshrl.u32 %v295, 7
      %v297 = vsub.s32 1, %v296
      %v298 = vrot.slane %v289, %v297
      %vm301 = vcmask 1040384
      %v302 = vsel %vm301, %v294, 0.0
      %v303 = vsel %vm301, %v298, 0.0
      %v304 = vadd.f32 %v302, %v303
      %305 = vadd.xlane.f32.xlu0 %v304
      %v306 = vpop.xlane.xlu0 %305
      %v307 = vrot.slane %v306, 4
      %v308 = vadd.f32 %v306, %v307
      %v309 = vrot.slane %v308, 2
      %v310 = vadd.f32 %v308, %v309
      %v311 = vrot.slane %v310, 1
      %v312 = vadd.f32 %v310, %v311
      %s313 = vtos %v312
      %v314 = vsel %vm243, 1.0, 0.0
      %v316 = vlaneseq
      %v317 = vshrl.u32 %v316, 7
      %v318 = vsub.s32 0, %v317
      %v319 = vrot.slane %v314, %v318
      %v320 = vlaneseq
      %v321 = vshrl.u32 %v320, 7
      %v322 = vsub.s32 1, %v321
      %v323 = vrot.slane %v314, %v322
      %v326 = vsel %vm301, %v319, 0.0
      %v327 = vsel %vm301, %v323, 0.0
      %v328 = vadd.f32 %v326, %v327
      %329 = vadd.xlane.f32.xlu0 %v328
      %v330 = vpop.xlane.xlu0 %329
      %v331 = vrot.slane %v330, 4
      %v332 = vadd.f32 %v330, %v331
      %v333 = vrot.slane %v332, 2
      %v334 = vadd.f32 %v332, %v333
      %v335 = vrot.slane %v334, 1
      %v336 = vadd.f32 %v334, %v335
      %s337 = vtos %v336
      %v340 = vunpack.c.l.s4 857870592
      %v341 = vunpack.c.0.s8 %v340
      %v342 = vlaneseq
      %v343 = vshrl.u32 %v342, 7
      %v344 = vsub.s32 %v341, %v343
      %v345 = vrot.slane %v245, %v344
      %v347 = vmul.f32 %v278, %v345
      %v350 = vunpack.c.l.s4 1966171168
      %v351 = vunpack.c.0.s8 %v350
      %v352 = vlaneseq
      %v353 = vshrl.u32 %v352, 7
      %v354 = vsub.s32 %v351, %v353
      %v355 = vrot.slane %v347, %v354
      %v356 = vcombine.high %v355, %v355
      %v358 = vsel %vm243, %v356, 0.0
      %v360 = vlaneseq
      %v361 = vshrl.u32 %v360, 7
      %v362 = vsub.s32 0, %v361
      %v363 = vrot.slane %v358, %v362
      %v364 = vlaneseq
      %v365 = vshrl.u32 %v364, 7
      %v366 = vsub.s32 1, %v365
      %v367 = vrot.slane %v358, %v366
      %v370 = vsel %vm301, %v363, 0.0
      %v371 = vsel %vm301, %v367, 0.0
      %v372 = vadd.f32 %v370, %v371
      %373 = vadd.xlane.f32.xlu0 %v372
      %v374 = vpop.xlane.xlu0 %373
      %v375 = vrot.slane %v374, 4
      %v376 = vadd.f32 %v374, %v375
      %v377 = vrot.slane %v376, 2
      %v378 = vadd.f32 %v376, %v377
      %v379 = vrot.slane %v378, 1
      %v380 = vadd.f32 %v378, %v379
      %s381 = vtos %v380
      %v382 = vadd.f32 %v278, %v345
      %v385 = vunpack.c.l.s4 1966171168
      %v386 = vunpack.c.0.s8 %v385
      %v387 = vlaneseq
      %v388 = vshrl.u32 %v387, 7
      %v389 = vsub.s32 %v386, %v388
      %v390 = vrot.slane %v382, %v389
      %v391 = vcombine.high %v390, %v390
      %v393 = vsel %vm243, %v391, 0.0
      %v395 = vlaneseq
      %v396 = vshrl.u32 %v395, 7
      %v397 = vsub.s32 0, %v396
      %v398 = vrot.slane %v393, %v397
      %v399 = vlaneseq
      %v400 = vshrl.u32 %v399, 7
      %v401 = vsub.s32 1, %v400
      %v402 = vrot.slane %v393, %v401
      %v405 = vsel %vm301, %v398, 0.0
      %v406 = vsel %vm301, %v402, 0.0
      %v407 = vadd.f32 %v405, %v406
      %408 = vadd.xlane.f32.xlu0 %v407
      %v409 = vpop.xlane.xlu0 %408
      %v410 = vrot.slane %v409, 4
      %v411 = vadd.f32 %v409, %v410
      %v412 = vrot.slane %v411, 2
      %v413 = vadd.f32 %v411, %v412
      %v414 = vrot.slane %v413, 1
      %v415 = vadd.f32 %v413, %v414
      %s416 = vtos %v415
      %vm417 = vcmp.eq.s32.totalorder %v217, 0
      %v418 = vstv %s313
      %v419 = vsel %vm417, %v418, 0.0
      %vm420 = vcmp.eq.s32.totalorder %v217, 1
      %v421 = vstv %s337
      %v422 = vsel %vm420, %v421, 0.0
      %v423 = vadd.f32 %v419, %v422
      %vm424 = vcmp.eq.s32.totalorder %v217, 2
      %v425 = vstv %s381
      %v426 = vsel %vm424, %v425, 0.0
      %v427 = vadd.f32 %v423, %v426
      %vm428 = vcmp.eq.s32.totalorder %v217, 3
      %v429 = vstv %s416
      %v430 = vsel %vm428, %v429, 0.0
      %v431 = vadd.f32 %v427, %v430
      %vm432 = vcmask 24576
      %433 = vst.msk [vmem:[%s208] sm:$0x1] %vm432, %v431
      %p434 = scmp.lt.s32.totalorder %s17, 1
      %s435 = scalar_select %p434, %s17, 1
      %p436 = scmp.lt.s32.totalorder %s18, 0
      %s437 = scalar_select %p436, %s18, 0
      %s438 = sadd.s32 %s437, %s435
      %s439 = scalar_lea.vmem %s2, %s438
      // Predicated region
      $region29: #{xe_dice_loss.1} parent=27 // pred_check
        %p440 = pneg %p101
      $region30: #{xe_dice_loss.1} parent=27 // pred_check_branch
        %442 = sbr.rel (%p440) target = $region32
      $region31: #{xe_dice_loss.1} parent=27 // pred_region
        _
      $region32: #{xe_dice_loss.1} parent=27 // pred_fallthru
        _
    $region28: #{xe_dice_loss.1} parent=5 // pred_fallthru
      _
    %p443 = scmp.le.s32.totalorder 2, %s8
    // Predicated region
    $region33: #{xe_dice_loss.1} parent=5 // pred_check
      %p444 = pneg %p443
    $region34: #{xe_dice_loss.1} parent=5 // pred_check_branch
      %446 = sbr.rel (%p444) target = $region36
    $region35: #{xe_dice_loss.1} parent=5 // pred_region
      %s447 = ssub.s32 %s8, 2
      // Predicated region
      $region37: #{xe_dice_loss.1} parent=35 // pred_check
        %p448 = pneg %p107
      $region38: #{xe_dice_loss.1} parent=35 // pred_check_branch
        %450 = sbr.rel (%p448) target = $region40
      $region39: #{xe_dice_loss.1} parent=35 // pred_region
        %p451 = scmp.lt.s32.totalorder %s19, 1
        %s452 = scalar_select %p451, %s19, 1
        %p453 = scmp.lt.s32.totalorder %s20, 0
        %s454 = scalar_select %p453, %s20, 0
        %s455 = sadd.s32 %s454, %s452
        %s456 = scalar_lea.vmem %s2, %s455
      $region40: #{xe_dice_loss.1} parent=35 // pred_fallthru
        _
    $region36: #{xe_dice_loss.1} parent=5 // pred_fallthru
      _
  $region6: #{xe_dice_loss.1} parent=0 // loop_footer
    %s12 = sadd.s32 1, %s8
  $region7: #{xe_dice_loss.1} parent=0 // loop_footer_branch
    %7 = sbr.rel target = $region3
  $region8: #{xe_dice_loss.1} parent=0 // loop_exit
    _

</llo_original>
